<compile_context>
chip_gen: v7x
topology: tpu7x:2x2x1
jax: 0.10.0
libtpu: 0.0.40
codegen_flags: <defaults>
</compile_context>

<pallas_src>
import jax
import jax.numpy as jnp
from jax.experimental import pallas as pl
from jax.experimental.pallas import tpu as pltpu

BN_EPS = 0.8          # nn.BatchNorm1d(n, 0.8): second positional arg is eps
LRELU_SLOPE = 0.2

H1_RAW = 100          # first hidden width in the PyTorch module
H1 = 128              # ... zero-padded to a full lane width
H2 = 128
H3 = 256


def _generator_kernel(z_ref, w1_ref, w2_ref, w3_ref, w4_ref, vec_ref, out_ref):
    """Whole MLP on one (full) batch: 4 matmuls + 3 fused (BN + LeakyReLU)."""
    dout = out_ref.shape[-1]          # lane-padded output width

    def matmul(x, w_ref):
        # bf16 operands on the MXU, f32 accumulation.
        return jnp.dot(x.astype(w_ref.dtype), w_ref[...],
                       preferred_element_type=jnp.float32)

    def bn_lrelu(h, gamma, beta):
        # Training-mode BatchNorm1d (batch mean, biased batch var) folded into
        # a single multiply-add per element.  rsqrt goes to the EUP slot.
        mean = jnp.mean(h, axis=0, keepdims=True)
        var = jnp.mean(h * h, axis=0, keepdims=True) - mean * mean
        scale = gamma * jax.lax.rsqrt(var + BN_EPS)
        shift = beta - mean * scale
        hn = h * scale + shift
        return jnp.where(hn > 0, hn, LRELU_SLOPE * hn)    # LeakyReLU(0.2)

    # Packed per-feature vectors (7 rows); static slices are free.
    g1, be1 = vec_ref[0:1, :H1], vec_ref[1:2, :H1]
    g2, be2 = vec_ref[2:3, :H2], vec_ref[3:4, :H2]
    g3, be3 = vec_ref[4:5, :H3], vec_ref[5:6, :H3]
    b4 = vec_ref[6:7, :dout]

    # Layer-1/2/3 biases are intentionally omitted: a linear bias followed by
    # training-mode BN is cancelled exactly by the batch-mean subtraction.
    h = bn_lrelu(matmul(z_ref[...], w1_ref), g1, be1)
    h = bn_lrelu(matmul(h, w2_ref), g2, be2)
    h = bn_lrelu(matmul(h, w3_ref), g3, be3)
    out_ref[...] = (matmul(h, w4_ref) + b4).astype(out_ref.dtype)


def generator_forward(z, params):
    """z: (B, D) or (G, B, D) float32.  params: output of pack_params().

    Each grid step processes one WHOLE batch of B rows, so BatchNorm batch
    statistics are exact.  With z of shape (G, B, D), G independent forward
    passes are fused into a single pallas_call (grid axis marked "parallel").
    """
    squeeze = (z.ndim == 2)
    if squeeze:
        z = z[None]
    G, B, D = z.shape

    w1, w2, w3, w4, vecs = (params["w1"], params["w2"], params["w3"],
                            params["w4"], params["vecs"])
    d_pad, out_pad = params["d_pad"], params["out_pad"]

    # Lane-dense z: pad the feature dim to a multiple of 128 (w1's rows are
    # zero-padded to match, so the padding contributes nothing).
    z_flat = jnp.pad(z.reshape(G * B, D), ((0, 0), (0, d_pad - D)))

    # Scoped VMEM sized from the batch: weights + per-batch activations (x2
    # headroom) + double-buffered z/out tiles + margin, clamped to [4, 64] MiB.
    weight_bytes = sum(int(a.size) * a.dtype.itemsize
                       for a in (w1, w2, w3, w4, vecs))
    act_bytes = B * (d_pad + H1 + H2 + 2 * H3 + out_pad) * 4 * 2
    io_bytes = 2 * B * (d_pad + out_pad) * 4
    vmem_bytes = int(min(max(weight_bytes + act_bytes + io_bytes + (2 << 20),
                             4 << 20), 64 << 20))
    # Beyond ~64 MiB (v7x per-TC VMEM) a two-pass exact BN over a micro-batch
    # grid axis would be needed; unnecessary at these layer widths.

    def resident(a):   # whole array, same block every grid step -> VMEM-resident
        return pl.BlockSpec(a.shape, lambda g: (0, 0))

    out = pl.pallas_call(
        _generator_kernel,
        out_shape=jax.ShapeDtypeStruct((G * B, out_pad), jnp.float32),
        grid=(G,),
        in_specs=[
            pl.BlockSpec((B, d_pad), lambda g: (g, 0)),    # z (pipelined)
            resident(w1), resident(w2), resident(w3), resident(w4),
            resident(vecs),
        ],
        out_specs=pl.BlockSpec((B, out_pad), lambda g: (g, 0)),
        compiler_params=pltpu.CompilerParams(
            dimension_semantics=("parallel",),
            vmem_limit_bytes=vmem_bytes),
    )(z_flat, w1, w2, w3, w4, vecs)

    out = out[:, :D].reshape(G, B, D)      # drop output lane padding
    return out[0] if squeeze else out


def init_params(key, data_length):
    """Deterministic synthetic parameters with the PyTorch module's shapes.
    Linear weights are stored transposed: (in_features, out_features)."""
    dims = [(data_length, H1_RAW), (H1_RAW, H2), (H2, H3), (H3, data_length)]
    keys = jax.random.split(key, 8)
    raw = {}
    for i, (din, dout) in enumerate(dims, start=1):
        kw, kb = keys[2 * (i - 1)], keys[2 * (i - 1) + 1]
        bound = 1.0 / jnp.sqrt(jnp.float32(din))
        raw[f"w{i}"] = jax.random.uniform(kw, (din, dout), jnp.float32,
                                          minval=-bound, maxval=bound)
        raw[f"b{i}"] = jax.random.uniform(kb, (dout,), jnp.float32,
                                          minval=-bound, maxval=bound)
    for i, d in zip((1, 2, 3), (H1_RAW, H2, H3)):
        raw[f"g{i}"] = jnp.ones((d,), jnp.float32)     # BN gamma
        raw[f"be{i}"] = jnp.zeros((d,), jnp.float32)   # BN beta
    return raw


def pack_params(raw, data_length, mxu_dtype=jnp.bfloat16):
    """Zero-pad to lane-dense widths, pack the 7 needed per-feature vectors
    into one array, and cast matmul weights to the MXU input dtype."""
    d_pad = ((data_length + 127) // 128) * 128
    out_pad = ((data_length + 127) // 128) * 128
    vec_w = max(H3, out_pad)

    w1 = jnp.pad(raw["w1"], ((0, d_pad - data_length), (0, H1 - H1_RAW)))
    w2 = jnp.pad(raw["w2"], ((0, H1 - H1_RAW), (0, 0)))            # (128, 128)
    w3 = raw["w3"]                                                 # (128, 256)
    w4 = jnp.pad(raw["w4"], ((0, 0), (0, out_pad - data_length)))  # (256, out_pad)

    def row(v):
        return jnp.pad(v, (0, vec_w - v.shape[0]))

    # gamma of the 100-wide BN is padded with ZEROS so the 28 padded lanes stay
    # exactly 0 through BN + LeakyReLU (w2's padded rows are zero as well).
    vecs = jnp.stack([
        row(raw["g1"]), row(raw["be1"]),
        row(raw["g2"]), row(raw["be2"]),
        row(raw["g3"]), row(raw["be3"]),
        row(raw["b4"]),
    ], axis=0).astype(jnp.float32)                                 # (7, vec_w)

    return {"w1": w1.astype(mxu_dtype), "w2": w2.astype(mxu_dtype),
            "w3": w3.astype(mxu_dtype), "w4": w4.astype(mxu_dtype),
            "vecs": vecs, "d_pad": d_pad, "out_pad": out_pad}


def generator_reference(z, raw):
    """Pure-JAX f32 reference with the exact PyTorch semantics (biases kept)."""
    def bn_lrelu(h, g, b):
        mean = jnp.mean(h, axis=0, keepdims=True)
        var = jnp.mean((h - mean) ** 2, axis=0, keepdims=True)
        hn = (h - mean) * jax.lax.rsqrt(var + BN_EPS) * g + b
        return jnp.where(hn > 0, hn, LRELU_SLOPE * hn)

    h = bn_lrelu(z @ raw["w1"] + raw["b1"], raw["g1"], raw["be1"])
    h = bn_lrelu(h @ raw["w2"] + raw["b2"], raw["g2"], raw["be2"])
    h = bn_lrelu(h @ raw["w3"] + raw["b3"], raw["g3"], raw["be3"])
    return h @ raw["w4"] + raw["b4"]


if __name__ == "__main__":
    key = jax.random.PRNGKey(0)
    k_params, k_z = jax.random.split(key)

    data_length = 32   # stand-in for opt.data_length
    batch = 8
    n_gen = 2          # independent noise batches fused into one pallas_call

    raw = init_params(k_params, data_length)
    params = pack_params(raw, data_length)
    z = jax.random.normal(k_z, (n_gen, batch, data_length), jnp.float32)

    out = jax.block_until_ready(generator_forward(z, params))
    assert out.shape == (n_gen, batch, data_length), out.shape

    # Sanity check vs. the f32 reference (loose tolerance: matmul operands are
    # bf16 on the MXU; all other math is f32).
    ref = jax.block_until_ready(
        jax.vmap(lambda zz: generator_reference(zz, raw))(z))
    max_err = float(jnp.max(jnp.abs(out - ref)))
    assert max_err < 0.25, f"max abs error vs reference: {max_err}"

    # Also exercise the plain (B, D) single-batch path.
    out1 = jax.block_until_ready(generator_forward(z[0], params))
    assert out1.shape == (batch, data_length), out1.shape
    max_err1 = float(jnp.max(jnp.abs(out1 - ref[0])))
    assert max_err1 < 0.25, f"max abs error (single batch): {max_err1}"

    print("KERNEL_OK")
</pallas_src>

<mosaic_0001>
module attributes {stable_mosaic.version = 11 : i64} {
  func.func @_generator_kernel(%arg0: i32, %arg1: memref<8x128xf32, #tpu.memory_space<vmem>>, %arg2: memref<128x128xbf16, #tpu.memory_space<vmem>>, %arg3: memref<128x128xbf16, #tpu.memory_space<vmem>>, %arg4: memref<128x256xbf16, #tpu.memory_space<vmem>>, %arg5: memref<256x128xbf16, #tpu.memory_space<vmem>>, %arg6: memref<7x256xf32, #tpu.memory_space<vmem>>, %arg7: memref<8x128xf32, #tpu.memory_space<vmem>>) attributes {dimension_semantics = [#tpu.dimension_semantics<parallel>], iteration_bounds = array<i64: 2>, scalar_prefetch = 0 : i64, scratch_operands = 0 : i64, tpu.core_type = #tpu.core_type<tc>, window_params = [{transform_indices = @transform_0, window_bounds = array<i64: 8, 128>}, {pipeline_mode = #tpu.pipeline_mode<synchronous>, transform_indices = @transform_1, window_bounds = array<i64: 128, 128>}, {pipeline_mode = #tpu.pipeline_mode<synchronous>, transform_indices = @transform_2, window_bounds = array<i64: 128, 128>}, {pipeline_mode = #tpu.pipeline_mode<synchronous>, transform_indices = @transform_3, window_bounds = array<i64: 128, 256>}, {pipeline_mode = #tpu.pipeline_mode<synchronous>, transform_indices = @transform_4, window_bounds = array<i64: 256, 128>}, {pipeline_mode = #tpu.pipeline_mode<synchronous>, transform_indices = @transform_5, window_bounds = array<i64: 7, 256>}, {transform_indices = @transform_6, window_bounds = array<i64: 8, 128>}]} {
    %c0 = arith.constant 0 : index
    %c0_0 = arith.constant 0 : index
    %0 = vector.load %arg6[%c0, %c0_0] : memref<7x256xf32, #tpu.memory_space<vmem>>, vector<1x128xf32>
    %c1 = arith.constant 1 : index
    %c0_1 = arith.constant 0 : index
    %1 = vector.load %arg6[%c1, %c0_1] : memref<7x256xf32, #tpu.memory_space<vmem>>, vector<1x128xf32>
    %c2 = arith.constant 2 : index
    %c0_2 = arith.constant 0 : index
    %2 = vector.load %arg6[%c2, %c0_2] : memref<7x256xf32, #tpu.memory_space<vmem>>, vector<1x128xf32>
    %c3 = arith.constant 3 : index
    %c0_3 = arith.constant 0 : index
    %3 = vector.load %arg6[%c3, %c0_3] : memref<7x256xf32, #tpu.memory_space<vmem>>, vector<1x128xf32>
    %c4 = arith.constant 4 : index
    %c0_4 = arith.constant 0 : index
    %4 = vector.load %arg6[%c4, %c0_4] : memref<7x256xf32, #tpu.memory_space<vmem>>, vector<1x256xf32>
    %c5 = arith.constant 5 : index
    %c0_5 = arith.constant 0 : index
    %5 = vector.load %arg6[%c5, %c0_5] : memref<7x256xf32, #tpu.memory_space<vmem>>, vector<1x256xf32>
    %c6 = arith.constant 6 : index
    %c0_6 = arith.constant 0 : index
    %6 = vector.load %arg6[%c6, %c0_6] : memref<7x256xf32, #tpu.memory_space<vmem>>, vector<1x128xf32>
    %c0_7 = arith.constant 0 : index
    %c0_8 = arith.constant 0 : index
    %7 = vector.load %arg1[%c0_7, %c0_8] : memref<8x128xf32, #tpu.memory_space<vmem>>, vector<8x128xf32>
    %8 = arith.truncf %7 : vector<8x128xf32> to vector<8x128xbf16>
    %c0_9 = arith.constant 0 : index
    %c0_10 = arith.constant 0 : index
    %9 = vector.load %arg2[%c0_9, %c0_10] : memref<128x128xbf16, #tpu.memory_space<vmem>>, vector<128x128xbf16>
    %cst = arith.constant dense<0.000000e+00> : vector<8x128xf32>
    %10 = tpu.matmul %8, %9, %cst {dimension_numbers = #tpu.dot_dimension_numbers<[1], [0], [0], [1], [0, 0, 1, 1], [], []>} : vector<8x128xbf16>, vector<128x128xbf16>, vector<8x128xf32> -> vector<8x128xf32>
    %cst_11 = arith.constant dense<0.000000e+00> : vector<128xf32>
    %11 = vector.multi_reduction <add>, %10, %cst_11 [0] : vector<8x128xf32> to vector<128xf32>
    %12 = vector.shape_cast %11 : vector<128xf32> to vector<1x128xf32>
    %cst_12 = arith.constant 8.000000e+00 : f32
    %13 = vector.broadcast %cst_12 : f32 to vector<1x128xf32>
    %14 = arith.divf %12, %13 : vector<1x128xf32>
    %15 = arith.mulf %10, %10 : vector<8x128xf32>
    %cst_13 = arith.constant dense<0.000000e+00> : vector<128xf32>
    %16 = vector.multi_reduction <add>, %15, %cst_13 [0] : vector<8x128xf32> to vector<128xf32>
    %17 = vector.shape_cast %16 : vector<128xf32> to vector<1x128xf32>
    %cst_14 = arith.constant 8.000000e+00 : f32
    %18 = vector.broadcast %cst_14 : f32 to vector<1x128xf32>
    %19 = arith.divf %17, %18 : vector<1x128xf32>
    %20 = arith.mulf %14, %14 : vector<1x128xf32>
    %21 = arith.subf %19, %20 : vector<1x128xf32>
    %cst_15 = arith.constant 8.000000e-01 : f32
    %22 = vector.broadcast %cst_15 : f32 to vector<1x128xf32>
    %23 = arith.addf %21, %22 : vector<1x128xf32>
    %24 = math.rsqrt %23 : vector<1x128xf32>
    %25 = arith.mulf %0, %24 : vector<1x128xf32>
    %26 = arith.mulf %14, %25 : vector<1x128xf32>
    %27 = arith.subf %1, %26 : vector<1x128xf32>
    %28 = vector.broadcast %25 : vector<1x128xf32> to vector<8x128xf32>
    %29 = arith.mulf %10, %28 : vector<8x128xf32>
    %30 = vector.broadcast %27 : vector<1x128xf32> to vector<8x128xf32>
    %31 = arith.addf %29, %30 : vector<8x128xf32>
    %cst_16 = arith.constant 0.000000e+00 : f32
    %32 = vector.broadcast %cst_16 : f32 to vector<8x128xf32>
    %33 = arith.cmpf ogt, %31, %32 : vector<8x128xf32>
    %cst_17 = arith.constant 2.000000e-01 : f32
    %34 = vector.broadcast %cst_17 : f32 to vector<8x128xf32>
    %35 = arith.mulf %34, %31 : vector<8x128xf32>
    %36 = arith.select %33, %31, %35 : vector<8x128xi1>, vector<8x128xf32>
    %37 = arith.truncf %36 : vector<8x128xf32> to vector<8x128xbf16>
    %c0_18 = arith.constant 0 : index
    %c0_19 = arith.constant 0 : index
    %38 = vector.load %arg3[%c0_18, %c0_19] : memref<128x128xbf16, #tpu.memory_space<vmem>>, vector<128x128xbf16>
    %cst_20 = arith.constant dense<0.000000e+00> : vector<8x128xf32>
    %39 = tpu.matmul %37, %38, %cst_20 {dimension_numbers = #tpu.dot_dimension_numbers<[1], [0], [0], [1], [0, 0, 1, 1], [], []>} : vector<8x128xbf16>, vector<128x128xbf16>, vector<8x128xf32> -> vector<8x128xf32>
    %cst_21 = arith.constant dense<0.000000e+00> : vector<128xf32>
    %40 = vector.multi_reduction <add>, %39, %cst_21 [0] : vector<8x128xf32> to vector<128xf32>
    %41 = vector.shape_cast %40 : vector<128xf32> to vector<1x128xf32>
    %cst_22 = arith.constant 8.000000e+00 : f32
    %42 = vector.broadcast %cst_22 : f32 to vector<1x128xf32>
    %43 = arith.divf %41, %42 : vector<1x128xf32>
    %44 = arith.mulf %39, %39 : vector<8x128xf32>
    %cst_23 = arith.constant dense<0.000000e+00> : vector<128xf32>
    %45 = vector.multi_reduction <add>, %44, %cst_23 [0] : vector<8x128xf32> to vector<128xf32>
    %46 = vector.shape_cast %45 : vector<128xf32> to vector<1x128xf32>
    %cst_24 = arith.constant 8.000000e+00 : f32
    %47 = vector.broadcast %cst_24 : f32 to vector<1x128xf32>
    %48 = arith.divf %46, %47 : vector<1x128xf32>
    %49 = arith.mulf %43, %43 : vector<1x128xf32>
    %50 = arith.subf %48, %49 : vector<1x128xf32>
    %cst_25 = arith.constant 8.000000e-01 : f32
    %51 = vector.broadcast %cst_25 : f32 to vector<1x128xf32>
    %52 = arith.addf %50, %51 : vector<1x128xf32>
    %53 = math.rsqrt %52 : vector<1x128xf32>
    %54 = arith.mulf %2, %53 : vector<1x128xf32>
    %55 = arith.mulf %43, %54 : vector<1x128xf32>
    %56 = arith.subf %3, %55 : vector<1x128xf32>
    %57 = vector.broadcast %54 : vector<1x128xf32> to vector<8x128xf32>
    %58 = arith.mulf %39, %57 : vector<8x128xf32>
    %59 = vector.broadcast %56 : vector<1x128xf32> to vector<8x128xf32>
    %60 = arith.addf %58, %59 : vector<8x128xf32>
    %cst_26 = arith.constant 0.000000e+00 : f32
    %61 = vector.broadcast %cst_26 : f32 to vector<8x128xf32>
    %62 = arith.cmpf ogt, %60, %61 : vector<8x128xf32>
    %cst_27 = arith.constant 2.000000e-01 : f32
    %63 = vector.broadcast %cst_27 : f32 to vector<8x128xf32>
    %64 = arith.mulf %63, %60 : vector<8x128xf32>
    %65 = arith.select %62, %60, %64 : vector<8x128xi1>, vector<8x128xf32>
    %66 = arith.truncf %65 : vector<8x128xf32> to vector<8x128xbf16>
    %c0_28 = arith.constant 0 : index
    %c0_29 = arith.constant 0 : index
    %67 = vector.load %arg4[%c0_28, %c0_29] : memref<128x256xbf16, #tpu.memory_space<vmem>>, vector<128x256xbf16>
    %cst_30 = arith.constant dense<0.000000e+00> : vector<8x256xf32>
    %68 = tpu.matmul %66, %67, %cst_30 {dimension_numbers = #tpu.dot_dimension_numbers<[1], [0], [0], [1], [0, 0, 1, 1], [], []>} : vector<8x128xbf16>, vector<128x256xbf16>, vector<8x256xf32> -> vector<8x256xf32>
    %cst_31 = arith.constant dense<0.000000e+00> : vector<256xf32>
    %69 = vector.multi_reduction <add>, %68, %cst_31 [0] : vector<8x256xf32> to vector<256xf32>
    %70 = vector.shape_cast %69 : vector<256xf32> to vector<1x256xf32>
    %cst_32 = arith.constant 8.000000e+00 : f32
    %71 = vector.broadcast %cst_32 : f32 to vector<1x256xf32>
    %72 = arith.divf %70, %71 : vector<1x256xf32>
    %73 = arith.mulf %68, %68 : vector<8x256xf32>
    %cst_33 = arith.constant dense<0.000000e+00> : vector<256xf32>
    %74 = vector.multi_reduction <add>, %73, %cst_33 [0] : vector<8x256xf32> to vector<256xf32>
    %75 = vector.shape_cast %74 : vector<256xf32> to vector<1x256xf32>
    %cst_34 = arith.constant 8.000000e+00 : f32
    %76 = vector.broadcast %cst_34 : f32 to vector<1x256xf32>
    %77 = arith.divf %75, %76 : vector<1x256xf32>
    %78 = arith.mulf %72, %72 : vector<1x256xf32>
    %79 = arith.subf %77, %78 : vector<1x256xf32>
    %cst_35 = arith.constant 8.000000e-01 : f32
    %80 = vector.broadcast %cst_35 : f32 to vector<1x256xf32>
    %81 = arith.addf %79, %80 : vector<1x256xf32>
    %82 = math.rsqrt %81 : vector<1x256xf32>
    %83 = arith.mulf %4, %82 : vector<1x256xf32>
    %84 = arith.mulf %72, %83 : vector<1x256xf32>
    %85 = arith.subf %5, %84 : vector<1x256xf32>
    %86 = vector.broadcast %83 : vector<1x256xf32> to vector<8x256xf32>
    %87 = arith.mulf %68, %86 : vector<8x256xf32>
    %88 = vector.broadcast %85 : vector<1x256xf32> to vector<8x256xf32>
    %89 = arith.addf %87, %88 : vector<8x256xf32>
    %cst_36 = arith.constant 0.000000e+00 : f32
    %90 = vector.broadcast %cst_36 : f32 to vector<8x256xf32>
    %91 = arith.cmpf ogt, %89, %90 : vector<8x256xf32>
    %cst_37 = arith.constant 2.000000e-01 : f32
    %92 = vector.broadcast %cst_37 : f32 to vector<8x256xf32>
    %93 = arith.mulf %92, %89 : vector<8x256xf32>
    %94 = arith.select %91, %89, %93 : vector<8x256xi1>, vector<8x256xf32>
    %95 = arith.truncf %94 : vector<8x256xf32> to vector<8x256xbf16>
    %c0_38 = arith.constant 0 : index
    %c0_39 = arith.constant 0 : index
    %96 = vector.load %arg5[%c0_38, %c0_39] : memref<256x128xbf16, #tpu.memory_space<vmem>>, vector<256x128xbf16>
    %cst_40 = arith.constant dense<0.000000e+00> : vector<8x128xf32>
    %97 = tpu.matmul %95, %96, %cst_40 {dimension_numbers = #tpu.dot_dimension_numbers<[1], [0], [0], [1], [0, 0, 1, 1], [], []>} : vector<8x256xbf16>, vector<256x128xbf16>, vector<8x128xf32> -> vector<8x128xf32>
    %98 = vector.broadcast %6 : vector<1x128xf32> to vector<8x128xf32>
    %99 = arith.addf %97, %98 : vector<8x128xf32>
    %c0_41 = arith.constant 0 : index
    %c0_42 = arith.constant 0 : index
    %100 = vector.load %arg7[%c0_41, %c0_42] : memref<8x128xf32, #tpu.memory_space<vmem>>, vector<8x128xf32>
    tpu.vector_store %arg7[%c0_41, %c0_42], %99 {strides = array<i32>} : memref<8x128xf32, #tpu.memory_space<vmem>>, vector<8x128xf32>,
    return
  }
  func.func @transform_0(%arg0: i32) -> (i32, i32) {
    %c0_i32 = arith.constant 0 : i32
    %c0_i32_0 = arith.constant 0 : i32
    return %arg0, %c0_i32 : i32, i32
  }
  func.func @transform_1(%arg0: i32) -> (i32, i32) {
    %c0_i32 = arith.constant 0 : i32
    %c0_i32_0 = arith.constant 0 : i32
    %c0_i32_1 = arith.constant 0 : i32
    return %c0_i32, %c0_i32_0 : i32, i32
  }
  func.func @transform_2(%arg0: i32) -> (i32, i32) {
    %c0_i32 = arith.constant 0 : i32
    %c0_i32_0 = arith.constant 0 : i32
    %c0_i32_1 = arith.constant 0 : i32
    return %c0_i32, %c0_i32_0 : i32, i32
  }
  func.func @transform_3(%arg0: i32) -> (i32, i32) {
    %c0_i32 = arith.constant 0 : i32
    %c0_i32_0 = arith.constant 0 : i32
    %c0_i32_1 = arith.constant 0 : i32
    return %c0_i32, %c0_i32_0 : i32, i32
  }
  func.func @transform_4(%arg0: i32) -> (i32, i32) {
    %c0_i32 = arith.constant 0 : i32
    %c0_i32_0 = arith.constant 0 : i32
    %c0_i32_1 = arith.constant 0 : i32
    return %c0_i32, %c0_i32_0 : i32, i32
  }
  func.func @transform_5(%arg0: i32) -> (i32, i32) {
    %c0_i32 = arith.constant 0 : i32
    %c0_i32_0 = arith.constant 0 : i32
    %c0_i32_1 = arith.constant 0 : i32
    return %c0_i32, %c0_i32_0 : i32, i32
  }
  func.func @transform_6(%arg0: i32) -> (i32, i32) {
    %c0_i32 = arith.constant 0 : i32
    %c0_i32_0 = arith.constant 0 : i32
    return %arg0, %c0_i32 : i32, i32
  }
}

</mosaic_0001>

<llo_original>
// kernel: tpu_custom_call.1
$region0: #{tpu_custom_call.1}
  #allocation0 [shape = 'u32[]', space=smem, size = 0x4, offset = 0x4, fixed_abs, tag = 'smem constant byte address 0x4 - core index']
  #allocation1 [shape = 'u32[144,128]{1,0:T(1,128)}', space=vmem, size = 0x12000, scoped, tag = 'internal scratch']
  %s0 = inlined_call_operand.hbm [shape: f32[16,128], index: 0, kind: input, shape index: {}]
  %s1 = inlined_call_operand.hbm [shape: bf16[128,128], index: 1, kind: input, shape index: {}]
  %s2 = inlined_call_operand.hbm [shape: bf16[128,128], index: 2, kind: input, shape index: {}]
  %s3 = inlined_call_operand.hbm [shape: bf16[128,256], index: 3, kind: input, shape index: {}]
  %s4 = inlined_call_operand.hbm [shape: bf16[256,128], index: 4, kind: input, shape index: {}]
  %s5 = inlined_call_operand.vmem [shape: f32[7,256], index: 5, kind: input, shape index: {}]
  %s6 = inlined_call_operand.hbm [shape: f32[16,128], index: 6, kind: output, shape index: {}]
  %s7 = sld [smem:[#allocation0]]
  $region77: #{tpu_custom_call.1} parent=0
    _
  %s9 = ssub.s32 1, %s7
  %s10 = scalar_select 0, %s9, %s7
  $region1: #{tpu_custom_call.1} parent=0
    #allocation2 [shape = 'u8[8192]{0}', space=vmem, size = 0x2000, scoped, tag = 'input window, operand 0']
    #allocation3 [shape = 's32[2]{0}', space=sflag, size = 0x8, scoped, tag = 'scoped memory for tpu_custom_call.1']
    #allocation4 [shape = 's32[2]{0}', space=sflag, size = 0x8, scoped, tag = 'scoped memory for tpu_custom_call.1']
    #allocation5 [shape = 'u8[32768]{0}', space=vmem, size = 0x8000, scoped, tag = 'input window, operand 1, single buffered']
    #allocation6 [shape = 's32[1]{0}', space=sflag, size = 0x4, scoped, tag = 'scoped memory for tpu_custom_call.1']
    #allocation7 [shape = 'u8[32768]{0}', space=vmem, size = 0x8000, scoped, tag = 'input window, operand 2, single buffered']
    #allocation8 [shape = 'u8[65536]{0}', space=vmem, size = 0x10000, scoped, tag = 'input window, operand 3, single buffered']
    #allocation9 [shape = 's32[1]{0}', space=sflag, size = 0x4, scoped, tag = 'scoped memory for tpu_custom_call.1']
    #allocation10 [shape = 'u8[65536]{0}', space=vmem, size = 0x10000, scoped, tag = 'input window, operand 4, single buffered']
    #allocation11 [shape = 'u8[8192]{0}', space=vmem, size = 0x2000, scoped, tag = 'output window, operand 0']
    %11 = vsyncpa [#allocation3], 0
    %s12 = scalar_lea.sflag [#allocation3], 1
    %13 = vsyncpa %s12, 0
    %14 = vsyncpa [#allocation6], 0
    %15 = vsyncpa [#allocation9], 0
    %16 = vsyncpa [#allocation4], 0
    %s17 = scalar_lea.sflag [#allocation4], 1
    %18 = vsyncpa %s17, 0
    loop: start=0, step=1, limit=4
    $region2: #{tpu_custom_call.1} parent=1 // loop_pre_header
      _
    $region3: #{tpu_custom_call.1} parent=1 // loop_header
      %s20 = sphi 0, %s24
      %p21 = scmp.ge.s32.totalorder %s20, 4
      %s30 = sphi 0, %s32
      %s33 = sphi 0, %s30
      %s34 = sphi 0, %s33
      %s50 = sphi 0, %s34
      %s54 = sphi 0, %s54
      %s56 = sphi 0, %s54
      %s57 = sphi 0, %s56
      %s71 = sphi 0, %s57
      %s75 = sphi 0, %s75
      %s77 = sphi 0, %s75
      %s78 = sphi 0, %s77
      %s92 = sphi 0, %s78
      %s96 = sphi 0, %s96
      %s98 = sphi 0, %s96
      %s99 = sphi 0, %s98
      %s113 = sphi 0, %s99
      %s117 = sphi 0, %s117
      %s119 = sphi 0, %s117
      %s120 = sphi 0, %s119
      %s134 = sphi 0, %s120
      %s138 = sphi 0, %s138
      %s140 = sphi 0, %s138
      %s141 = sphi 0, %s140
      %s155 = sphi 0, %s141
      %s161 = sphi 0, %s163
      %s164 = sphi 0, %s161
      %s165 = sphi 0, %s164
      %s181 = sphi 0, %s165
    $region4: #{tpu_custom_call.1} parent=1 // loop_header_branch
      %23 = sbr.rel (%p21) target = $region8
    $region5: #{tpu_custom_call.1} parent=1 // loop_body
      %s25 = ssub.s32 %s20, 1
      %s26 = ssub.s32 %s20, 2
      %s27 = sadd.s32 %s20, 1
      %s28 = ssub.s32 %s20, %s27
      %p29 = scmp.eq.s32.totalorder %s28, 0
      %s31 = sadd.s32 %s30, 1
      %s32 = scalar_select %p29, %s30, %s31
      %p35 = pneg %p29
      %p36 = scmp.eq.s32.totalorder %s20, 1
      %p37 = por %p35, %p36
      %p38 = scmp.ne.s32.totalorder %s30, %s33
      %p39 = scmp.eq.s32.totalorder %s20, 0
      %p40 = por %p38, %p39
      %p41 = scmp.ne.s32.totalorder %s30, %s33
      %p42 = scmp.eq.s32.totalorder %s25, 1
      %p43 = por %p41, %p42
      %p44 = scmp.ne.s32.totalorder %s33, %s34
      %p45 = scmp.eq.s32.totalorder %s25, 0
      %p46 = por %p44, %p45
      %p47 = scmp.ne.s32.totalorder %s33, %s34
      %p48 = scmp.eq.s32.totalorder %s26, 1
      %p49 = por %p47, %p48
      %p51 = scmp.ne.s32.totalorder %s34, %s50
      %p52 = scmp.eq.s32.totalorder %s26, 0
      %p53 = por %p51, %p52
      %s55 = sadd.s32 %s54, 1
      %p58 = scmp.eq.s32.totalorder %s20, 1
      %p59 = scmp.ne.s32.totalorder %s54, %s56
      %p60 = scmp.eq.s32.totalorder %s20, 0
      %p61 = por %p59, %p60
      %p62 = scmp.ne.s32.totalorder %s54, %s56
      %p63 = scmp.eq.s32.totalorder %s25, 1
      %p64 = por %p62, %p63
      %p65 = scmp.ne.s32.totalorder %s56, %s57
      %p66 = scmp.eq.s32.totalorder %s25, 0
      %p67 = por %p65, %p66
      %p68 = scmp.ne.s32.totalorder %s56, %s57
      %p69 = scmp.eq.s32.totalorder %s26, 1
      %p70 = por %p68, %p69
      %p72 = scmp.ne.s32.totalorder %s57, %s71
      %p73 = scmp.eq.s32.totalorder %s26, 0
      %p74 = por %p72, %p73
      %s76 = sadd.s32 %s75, 1
      %p79 = scmp.eq.s32.totalorder %s20, 1
      %p80 = scmp.ne.s32.totalorder %s75, %s77
      %p81 = scmp.eq.s32.totalorder %s20, 0
      %p82 = por %p80, %p81
      %p83 = scmp.ne.s32.totalorder %s75, %s77
      %p84 = scmp.eq.s32.totalorder %s25, 1
      %p85 = por %p83, %p84
      %p86 = scmp.ne.s32.totalorder %s77, %s78
      %p87 = scmp.eq.s32.totalorder %s25, 0
      %p88 = por %p86, %p87
      %p89 = scmp.ne.s32.totalorder %s77, %s78
      %p90 = scmp.eq.s32.totalorder %s26, 1
      %p91 = por %p89, %p90
      %p93 = scmp.ne.s32.totalorder %s78, %s92
      %p94 = scmp.eq.s32.totalorder %s26, 0
      %p95 = por %p93, %p94
      %s97 = sadd.s32 %s96, 1
      %p100 = scmp.eq.s32.totalorder %s20, 1
      %p101 = scmp.ne.s32.totalorder %s96, %s98
      %p102 = scmp.eq.s32.totalorder %s20, 0
      %p103 = por %p101, %p102
      %p104 = scmp.ne.s32.totalorder %s96, %s98
      %p105 = scmp.eq.s32.totalorder %s25, 1
      %p106 = por %p104, %p105
      %p107 = scmp.ne.s32.totalorder %s98, %s99
      %p108 = scmp.eq.s32.totalorder %s25, 0
      %p109 = por %p107, %p108
      %p110 = scmp.ne.s32.totalorder %s98, %s99
      %p111 = scmp.eq.s32.totalorder %s26, 1
      %p112 = por %p110, %p111
      %p114 = scmp.ne.s32.totalorder %s99, %s113
      %p115 = scmp.eq.s32.totalorder %s26, 0
      %p116 = por %p114, %p115
      %s118 = sadd.s32 %s117, 1
      %p121 = scmp.eq.s32.totalorder %s20, 1
      %p122 = scmp.ne.s32.totalorder %s117, %s119
      %p123 = scmp.eq.s32.totalorder %s20, 0
      %p124 = por %p122, %p123
      %p125 = scmp.ne.s32.totalorder %s117, %s119
      %p126 = scmp.eq.s32.totalorder %s25, 1
      %p127 = por %p125, %p126
      %p128 = scmp.ne.s32.totalorder %s119, %s120
      %p129 = scmp.eq.s32.totalorder %s25, 0
      %p130 = por %p128, %p129
      %p131 = scmp.ne.s32.totalorder %s119, %s120
      %p132 = scmp.eq.s32.totalorder %s26, 1
      %p133 = por %p131, %p132
      %p135 = scmp.ne.s32.totalorder %s120, %s134
      %p136 = scmp.eq.s32.totalorder %s26, 0
      %p137 = por %p135, %p136
      %s139 = sadd.s32 %s138, 1
      %p142 = scmp.eq.s32.totalorder %s20, 1
      %p143 = scmp.ne.s32.totalorder %s138, %s140
      %p144 = scmp.eq.s32.totalorder %s20, 0
      %p145 = por %p143, %p144
      %p146 = scmp.ne.s32.totalorder %s138, %s140
      %p147 = scmp.eq.s32.totalorder %s25, 1
      %p148 = por %p146, %p147
      %p149 = scmp.ne.s32.totalorder %s140, %s141
      %p150 = scmp.eq.s32.totalorder %s25, 0
      %p151 = por %p149, %p150
      %p152 = scmp.ne.s32.totalorder %s140, %s141
      %p153 = scmp.eq.s32.totalorder %s26, 1
      %p154 = por %p152, %p153
      %p156 = scmp.ne.s32.totalorder %s141, %s155
      %p157 = scmp.eq.s32.totalorder %s26, 0
      %p158 = por %p156, %p157
      %s159 = ssub.s32 %s20, %s27
      %p160 = scmp.eq.s32.totalorder %s159, 0
      %s162 = sadd.s32 %s161, 1
      %s163 = scalar_select %p160, %s161, %s162
      %p166 = pneg %p160
      %p167 = scmp.eq.s32.totalorder %s20, 1
      %p168 = por %p166, %p167
      %p169 = scmp.ne.s32.totalorder %s161, %s164
      %p170 = scmp.eq.s32.totalorder %s20, 0
      %p171 = por %p169, %p170
      %p172 = scmp.ne.s32.totalorder %s161, %s164
      %p173 = scmp.eq.s32.totalorder %s25, 1
      %p174 = por %p172, %p173
      %p175 = scmp.ne.s32.totalorder %s164, %s165
      %p176 = scmp.eq.s32.totalorder %s25, 0
      %p177 = por %p175, %p176
      %p178 = scmp.ne.s32.totalorder %s164, %s165
      %p179 = scmp.eq.s32.totalorder %s26, 1
      %p180 = por %p178, %p179
      %p182 = scmp.ne.s32.totalorder %s165, %s181
      %p183 = scmp.eq.s32.totalorder %s26, 0
      %p184 = por %p182, %p183
      %p185 = scmp.le.s32.totalorder 1, %s20
      %p186 = scmp.lt.s32.totalorder %s20, 3
      %p187 = pnand %p185, %p186
      %p188 = pneg %p187
      // Predicated region
      $region9: #{tpu_custom_call.1} parent=5 // pred_check
        _
      $region10: #{tpu_custom_call.1} parent=5 // pred_check_branch
        %190 = sbr.rel (%p187) target = $region12
      $region11: #{tpu_custom_call.1} parent=5 // pred_region
        %s191 = ssub.s32 %s20, 1
        // Predicated region
        $region13: #{tpu_custom_call.1} parent=11 // pred_check
          %p192 = pneg %p67
        $region14: #{tpu_custom_call.1} parent=11 // pred_check_branch
          %194 = sbr.rel (%p192) target = $region16
        $region15: #{tpu_custom_call.1} parent=11 // pred_region
          %s196 = ssub.s32 1024, 1024
          %197 = vsyncadd [#allocation6], %s196
          %s198 = sshll.u32 [#allocation5], 4
          %s199 = int_to_ptr.vmem [resolvable:$true] %s198
          %204 = dma.hbm_to_vmem [thread:$0]  %s1, 1024, %s199, [#allocation6], 64, 64, 4
        $region16: #{tpu_custom_call.1} parent=11 // pred_fallthru
          _
        // Predicated region
        $region17: #{tpu_custom_call.1} parent=11 // pred_check
          %p205 = pneg %p88
        $region18: #{tpu_custom_call.1} parent=11 // pred_check_branch
          %207 = sbr.rel (%p205) target = $region20
        $region19: #{tpu_custom_call.1} parent=11 // pred_region
          %s209 = ssub.s32 1024, 1024
          %210 = vsyncadd [#allocation6], %s209
          %s211 = sshll.u32 [#allocation7], 4
          %s212 = int_to_ptr.vmem [resolvable:$true] %s211
          %217 = dma.hbm_to_vmem [thread:$0]  %s2, 1024, %s212, [#allocation6], 64, 64, 4
        $region20: #{tpu_custom_call.1} parent=11 // pred_fallthru
          _
        // Predicated region
        $region21: #{tpu_custom_call.1} parent=11 // pred_check
          %p218 = pneg %p109
        $region22: #{tpu_custom_call.1} parent=11 // pred_check_branch
          %220 = sbr.rel (%p218) target = $region24
        $region23: #{tpu_custom_call.1} parent=11 // pred_region
          %s222 = ssub.s32 2048, 2048
          %223 = vsyncadd [#allocation9], %s222
          %s224 = sshll.u32 [#allocation8], 4
          %s225 = int_to_ptr.vmem [resolvable:$true] %s224
          %230 = dma.hbm_to_vmem [thread:$0]  %s3, 2048, %s225, [#allocation9], 128, 128, 8
        $region24: #{tpu_custom_call.1} parent=11 // pred_fallthru
          _
        // Predicated region
        $region25: #{tpu_custom_call.1} parent=11 // pred_check
          %p231 = pneg %p130
        $region26: #{tpu_custom_call.1} parent=11 // pred_check_branch
          %233 = sbr.rel (%p231) target = $region28
        $region27: #{tpu_custom_call.1} parent=11 // pred_region
          %s235 = ssub.s32 2048, 2048
          %236 = vsyncadd [#allocation9], %s235
          %s237 = sshll.u32 [#allocation10], 4
          %s238 = int_to_ptr.vmem [resolvable:$true] %s237
          %243 = dma.hbm_to_vmem [thread:$0]  %s4, 2048, %s238, [#allocation9], 64, 64, 4
        $region28: #{tpu_custom_call.1} parent=11 // pred_fallthru
          _
        // Predicated region
        $region29: #{tpu_custom_call.1} parent=11 // pred_check
          %p244 = pneg %p151
        $region30: #{tpu_custom_call.1} parent=11 // pred_check_branch
          %246 = sbr.rel (%p244) target = $region32
        $region31: #{tpu_custom_call.1} parent=11 // pred_region
          _
        $region32: #{tpu_custom_call.1} parent=11 // pred_fallthru
          _
      $region12: #{tpu_custom_call.1} parent=5 // pred_fallthru
        _
      %p247 = scmp.lt.s32.totalorder %s20, 2
      // Predicated region
      $region33: #{tpu_custom_call.1} parent=5 // pred_check
        %p248 = pneg %p247
      $region34: #{tpu_custom_call.1} parent=5 // pred_check_branch
        %250 = sbr.rel (%p248) target = $region36
      $region35: #{tpu_custom_call.1} parent=5 // pred_region
        // Predicated region
        $region37: #{tpu_custom_call.1} parent=35 // pred_check
          %p251 = pneg %p40
        $region38: #{tpu_custom_call.1} parent=35 // pred_check_branch
          %253 = sbr.rel (%p251) target = $region40
        $region39: #{tpu_custom_call.1} parent=35 // pred_region
          %s254 = sand.u32 %s30, 1
          %s255 = scalar_lea.sflag [#allocation3], %s254
          %s256 = sand.u32 %s30, 1
          %s257 = smul.addr %s256, 8
          %s258 = scalar_lea.vmem [#allocation2], %s257
          %s260 = ssub.s32 128, 128
          %261 = vsyncadd %s255, %s260
          %s262 = smul.addr %s20, 128
          %s263 = scalar_lea.hbm %s0, %s262
          %s265 = sshll.u32 %s258, 4
          %s266 = int_to_ptr.vmem [resolvable:$true] %s265
          %268 = dma.hbm_to_vmem [thread:$0]  %s263, 128, %s266, %s255
        $region40: #{tpu_custom_call.1} parent=35 // pred_fallthru
          _
      $region36: #{tpu_custom_call.1} parent=5 // pred_fallthru
        _
      %p269 = scmp.le.s32.totalorder 1, %s20
      %p270 = scmp.lt.s32.totalorder %s20, 3
      %p271 = pnand %p269, %p270
      %p272 = pneg %p271
      // Predicated region
      $region41: #{tpu_custom_call.1} parent=5 // pred_check
        _
      $region42: #{tpu_custom_call.1} parent=5 // pred_check_branch
        %274 = sbr.rel (%p271) target = $region44
      $region43: #{tpu_custom_call.1} parent=5 // pred_region
        %s275 = ssub.s32 %s20, 1
        %s276 = sand.u32 %s33, 1
        %s277 = scalar_lea.sflag [#allocation3], %s276
        %s278 = sand.u32 %s33, 1
        %s279 = smul.addr %s278, 8
        %s280 = scalar_lea.vmem [#allocation2], %s279
        // Predicated region
        $region45: #{tpu_custom_call.1} parent=43 // pred_check
          %p281 = pneg %p46
        $region46: #{tpu_custom_call.1} parent=43 // pred_check_branch
          %283 = sbr.rel (%p281) target = $region48
        $region47: #{tpu_custom_call.1} parent=43 // pred_region
          %284 = dma.done %s277, 128
        $region48: #{tpu_custom_call.1} parent=43 // pred_fallthru
          _
        // Predicated region
        $region49: #{tpu_custom_call.1} parent=43 // pred_check
          %p285 = pneg %p67
        $region50: #{tpu_custom_call.1} parent=43 // pred_check_branch
          %287 = sbr.rel (%p285) target = $region52
        $region51: #{tpu_custom_call.1} parent=43 // pred_region
          %288 = dma.done [#allocation6], 1024
        $region52: #{tpu_custom_call.1} parent=43 // pred_fallthru
          _
        // Predicated region
        $region53: #{tpu_custom_call.1} parent=43 // pred_check
          %p289 = pneg %p88
        $region54: #{tpu_custom_call.1} parent=43 // pred_check_branch
          %291 = sbr.rel (%p289) target = $region56
        $region55: #{tpu_custom_call.1} parent=43 // pred_region
          %292 = dma.done [#allocation6], 1024
        $region56: #{tpu_custom_call.1} parent=43 // pred_fallthru
          _
        // Predicated region
        $region57: #{tpu_custom_call.1} parent=43 // pred_check
          %p293 = pneg %p109
        $region58: #{tpu_custom_call.1} parent=43 // pred_check_branch
          %295 = sbr.rel (%p293) target = $region60
        $region59: #{tpu_custom_call.1} parent=43 // pred_region
          %296 = dma.done [#allocation9], 2048
        $region60: #{tpu_custom_call.1} parent=43 // pred_fallthru
          _
        // Predicated region
        $region61: #{tpu_custom_call.1} parent=43 // pred_check
          %p297 = pneg %p130
        $region62: #{tpu_custom_call.1} parent=43 // pred_check_branch
          %299 = sbr.rel (%p297) target = $region64
        $region63: #{tpu_custom_call.1} parent=43 // pred_region
          %300 = dma.done [#allocation9], 2048
        $region64: #{tpu_custom_call.1} parent=43 // pred_fallthru
          _
        %s301 = sand.u32 %s33, 1
        %s302 = scalar_lea.sflag [#allocation3], %s301
        %s303 = sand.u32 %s33, 1
        %s304 = smul.addr %s303, 8
        %s305 = scalar_lea.vmem [#allocation2], %s304
        %p306 = pneg %p46
        %p307 = pneg %p43
        %p308 = pneg %p67
        %p309 = pneg %p64
        %p310 = pneg %p88
        %p311 = pneg %p85
        %p312 = pneg %p109
        %p313 = pneg %p106
        %p314 = pneg %p130
        %p315 = pneg %p127
        %p316 = pneg %p151
        %p317 = pneg %p148
        %p318 = pneg %p177
        %p319 = pneg %p174
        %s320 = sand.u32 %s164, 1
        %s321 = scalar_lea.sflag [#allocation4], %s320
        %s322 = sand.u32 %s164, 1
        %s323 = smul.addr %s322, 8
        %s324 = scalar_lea.vmem [#allocation11], %s323
        %v326 = vld [vmem:[%s5] ss:$0 sm:$0xff]
        %v327 = vld [vmem:[%s5 + $0x1] ss:$0 sm:$0xff]
        %v328 = vld [vmem:[%s5 + $0x2] ss:$0 sm:$0xff]
        %v329 = vld [vmem:[%s5 + $0x3] ss:$0 sm:$0xff]
        %s330 = scalar_lea.vmem %s5, 4
        %v331 = vld [vmem:[%s330] ss:$8 sm:$0x3]
        %s332 = scalar_lea.vmem %s5, 5
        %v333 = vld [vmem:[%s332] ss:$8 sm:$0x3]
        %v334 = vld [vmem:[%s5 + $0x6] ss:$0 sm:$0xff]
        %v335 = vld [vmem:[%s280] sm:$0xff]
        %v336 = vpack.c.bf16 %v335, %v335
        %v337 = vld [vmem:[#allocation5] sm:$0xf]
        %v338 = vld [vmem:[#allocation5 + $0x4] sm:$0xf]
        %v339 = vld [vmem:[#allocation5 + $0x8] sm:$0xf]
        %v340 = vld [vmem:[#allocation5 + $0xc] sm:$0xf]
        %v341 = vld [vmem:[#allocation5 + $0x10] sm:$0xf]
        %v342 = vld [vmem:[#allocation5 + $0x14] sm:$0xf]
        %v343 = vld [vmem:[#allocation5 + $0x18] sm:$0xf]
        %v344 = vld [vmem:[#allocation5 + $0x1c] sm:$0xf]
        %v345 = vld [vmem:[#allocation5 + $0x20] sm:$0xf]
        %v346 = vld [vmem:[#allocation5 + $0x24] sm:$0xf]
        %v347 = vld [vmem:[#allocation5 + $0x28] sm:$0xf]
        %v348 = vld [vmem:[#allocation5 + $0x2c] sm:$0xf]
        %v349 = vld [vmem:[#allocation5 + $0x30] sm:$0xf]
        %v350 = vld [vmem:[#allocation5 + $0x34] sm:$0xf]
        %v351 = vld [vmem:[#allocation5 + $0x38] sm:$0xf]
        %v352 = vld [vmem:[#allocation5 + $0x3c] sm:$0xf]
        %v369 = vunpack.c.l.b16 %v337
        %v370 = vunpack.c.l.b16 %v338
        %v371 = vunpack.c.l.b16 %v339
        %v372 = vunpack.c.l.b16 %v340
        %v373 = vunpack.c.l.b16 %v341
        %v374 = vunpack.c.l.b16 %v342
        %v375 = vunpack.c.l.b16 %v343
        %v376 = vunpack.c.l.b16 %v344
        %v377 = vunpack.c.l.b16 %v345
        %v378 = vunpack.c.l.b16 %v346
        %v379 = vunpack.c.l.b16 %v347
        %v380 = vunpack.c.l.b16 %v348
        %v381 = vunpack.c.l.b16 %v349
        %v382 = vunpack.c.l.b16 %v350
        %v383 = vunpack.c.l.b16 %v351
        %v384 = vunpack.c.l.b16 %v352
        %v385 = vpack.c.b16 %v370, %v369
        %v386 = vpack.c.b16 %v372, %v371
        %v387 = vpack.c.b16 %v374, %v373
        %v388 = vpack.c.b16 %v376, %v375
        %v389 = vpack.c.b16 %v378, %v377
        %v390 = vpack.c.b16 %v380, %v379
        %v391 = vpack.c.b16 %v382, %v381
        %v392 = vpack.c.b16 %v384, %v383
        %401 = vmatprep.subr.bf16.mxu0 0
        %402 = vmatpush1.bf16.msra.mxu0 %v385
        %403 = vmatprep.subr.bf16.mxu0 0
        %404 = vmatpush1.bf16.msra.mxu0 %v386
        %405 = vmatprep.subr.bf16.mxu0 0
        %406 = vmatpush1.bf16.msra.mxu0 %v387
        %407 = vmatprep.subr.bf16.mxu0 0
        %408 = vmatpush1.bf16.msra.mxu0 %v388
        %409 = vmatprep.subr.bf16.mxu0 0
        %410 = vmatpush1.bf16.msra.mxu0 %v389
        %411 = vmatprep.subr.bf16.mxu0 0
        %412 = vmatpush1.bf16.msra.mxu0 %v390
        %413 = vmatprep.subr.bf16.mxu0 0
        %414 = vmatpush1.bf16.msra.mxu0 %v391
        %415 = vmatprep.subr.bf16.mxu0 0
        %416 = vmatpush1.bf16.msra.mxu0 %v392
        %417 = vmatprep.subr.bf16.mxu0 0
        %418 = vmatpush1.bf16.msra.mxu0 0
        %419 = vmatprep.subr.bf16.mxu0 0
        %420 = vmatpush1.bf16.msra.mxu0 0
        %421 = vmatprep.subr.bf16.mxu0 0
        %422 = vmatpush1.bf16.msra.mxu0 0
        %423 = vmatprep.subr.bf16.mxu0 0
        %424 = vmatpush1.bf16.msra.mxu0 0
        %425 = vmatprep.subr.bf16.mxu0 0
        %426 = vmatpush1.bf16.msra.mxu0 0
        %427 = vmatprep.subr.bf16.mxu0 0
        %428 = vmatpush1.bf16.msra.mxu0 0
        %429 = vmatprep.subr.bf16.mxu0 0
        %430 = vmatpush1.bf16.msra.mxu0 0
        %431 = vmatprep.subr.bf16.mxu0 0
        %432 = vmatpush1.bf16.msra.mxu0 0
        %433 = vmatprep.mubr.bf16.mxu0 0
        %434 = vmatmul.mubr.bf16.gmra.mrb[0].mxu0 %v336
        %v435 = vpop.f32.mrb[0].mxu0
        %v436 = vadd.f32 0.0, %v435
        %v437 = vpop.f32.mrb[0].mxu0
        %v438 = vpop.f32.mrb[0].mxu0
        %v439 = vpop.f32.mrb[0].mxu0
        %440 = vdwg.mxu0
        %v441 = vrot.slane %v436, 4
        %v442 = vadd.f32 %v436, %v441
        %v443 = vrot.slane %v442, 2
        %v444 = vadd.f32 %v442, %v443
        %v445 = vrot.slane %v444, 1
        %v446 = vadd.f32 %v444, %v445
        %v447 = vrcp.pop 8.0
        %v448 = vmul.f32 %v446, %v447
        %v449 = vmul.f32 %v436, %v436
        %v450 = vrot.slane %v449, 4
        %v451 = vadd.f32 %v449, %v450
        %v452 = vrot.slane %v451, 2
        %v453 = vadd.f32 %v451, %v452
        %v454 = vrot.slane %v453, 1
        %v455 = vadd.f32 %v453, %v454
        %v456 = vmul.f32 %v455, %v447
        %v457 = vmul.f32 %v448, %v448
        %v458 = vsub.f32 %v456, %v457
        %v459 = vadd.f32 %v458, 0.8
        %v460 = vrsqrt.pop %v459
        %v461 = vmul.f32 %v326, %v460
        %v462 = vmul.f32 %v448, %v461
        %v463 = vsub.f32 %v327, %v462
        %v464 = vmul.f32 %v436, %v461
        %v465 = vadd.f32 %v464, %v463
        %vm466 = vcmp.gt.f32.partialorder %v465, 0.0
        %v467 = vmul.f32 %v465, 0.2
        %v468 = vsel %vm466, %v465, %v467
        %v469 = vpack.c.bf16 %v468, %v468
        %v470 = vld [vmem:[#allocation7] sm:$0xf]
        %v471 = vld [vmem:[#allocation7 + $0x4] sm:$0xf]
        %v472 = vld [vmem:[#allocation7 + $0x8] sm:$0xf]
        %v473 = vld [vmem:[#allocation7 + $0xc] sm:$0xf]
        %v474 = vld [vmem:[#allocation7 + $0x10] sm:$0xf]
        %v475 = vld [vmem:[#allocation7 + $0x14] sm:$0xf]
        %v476 = vld [vmem:[#allocation7 + $0x18] sm:$0xf]
        %v477 = vld [vmem:[#allocation7 + $0x1c] sm:$0xf]
        %v478 = vld [vmem:[#allocation7 + $0x20] sm:$0xf]
        %v479 = vld [vmem:[#allocation7 + $0x24] sm:$0xf]
        %v480 = vld [vmem:[#allocation7 + $0x28] sm:$0xf]
        %v481 = vld [vmem:[#allocation7 + $0x2c] sm:$0xf]
        %v482 = vld [vmem:[#allocation7 + $0x30] sm:$0xf]
        %v483 = vld [vmem:[#allocation7 + $0x34] sm:$0xf]
        %v484 = vld [vmem:[#allocation7 + $0x38] sm:$0xf]
        %v485 = vld [vmem:[#allocation7 + $0x3c] sm:$0xf]
        %v502 = vunpack.c.l.b16 %v470
        %v503 = vunpack.c.l.b16 %v471
        %v504 = vunpack.c.l.b16 %v472
        %v505 = vunpack.c.l.b16 %v473
        %v506 = vunpack.c.l.b16 %v474
        %v507 = vunpack.c.l.b16 %v475
        %v508 = vunpack.c.l.b16 %v476
        %v509 = vunpack.c.l.b16 %v477
        %v510 = vunpack.c.l.b16 %v478
        %v511 = vunpack.c.l.b16 %v479
        %v512 = vunpack.c.l.b16 %v480
        %v513 = vunpack.c.l.b16 %v481
        %v514 = vunpack.c.l.b16 %v482
        %v515 = vunpack.c.l.b16 %v483
        %v516 = vunpack.c.l.b16 %v484
        %v517 = vunpack.c.l.b16 %v485
        %v518 = vpack.c.b16 %v503, %v502
        %v519 = vpack.c.b16 %v505, %v504
        %v520 = vpack.c.b16 %v507, %v506
        %v521 = vpack.c.b16 %v509, %v508
        %v522 = vpack.c.b16 %v511, %v510
        %v523 = vpack.c.b16 %v513, %v512
        %v524 = vpack.c.b16 %v515, %v514
        %v525 = vpack.c.b16 %v517, %v516
        %534 = vmatprep.subr.bf16.mxu0 0
        %535 = vmatpush1.bf16.msra.mxu0 %v518
        %536 = vmatprep.subr.bf16.mxu0 0
        %537 = vmatpush1.bf16.msra.mxu0 %v519
        %538 = vmatprep.subr.bf16.mxu0 0
        %539 = vmatpush1.bf16.msra.mxu0 %v520
        %540 = vmatprep.subr.bf16.mxu0 0
        %541 = vmatpush1.bf16.msra.mxu0 %v521
        %542 = vmatprep.subr.bf16.mxu0 0
        %543 = vmatpush1.bf16.msra.mxu0 %v522
        %544 = vmatprep.subr.bf16.mxu0 0
        %545 = vmatpush1.bf16.msra.mxu0 %v523
        %546 = vmatprep.subr.bf16.mxu0 0
        %547 = vmatpush1.bf16.msra.mxu0 %v524
        %548 = vmatprep.subr.bf16.mxu0 0
        %549 = vmatpush1.bf16.msra.mxu0 %v525
        %550 = vmatprep.subr.bf16.mxu0 0
        %551 = vmatpush1.bf16.msra.mxu0 0
        %552 = vmatprep.subr.bf16.mxu0 0
        %553 = vmatpush1.bf16.msra.mxu0 0
        %554 = vmatprep.subr.bf16.mxu0 0
        %555 = vmatpush1.bf16.msra.mxu0 0
        %556 = vmatprep.subr.bf16.mxu0 0
        %557 = vmatpush1.bf16.msra.mxu0 0
        %558 = vmatprep.subr.bf16.mxu0 0
        %559 = vmatpush1.bf16.msra.mxu0 0
        %560 = vmatprep.subr.bf16.mxu0 0
        %561 = vmatpush1.bf16.msra.mxu0 0
        %562 = vmatprep.subr.bf16.mxu0 0
        %563 = vmatpush1.bf16.msra.mxu0 0
        %564 = vmatprep.subr.bf16.mxu0 0
        %565 = vmatpush1.bf16.msra.mxu0 0
        %566 = vmatprep.mubr.bf16.mxu0 0
        %567 = vmatmul.mubr.bf16.gmra.mrb[0].mxu0 %v469
        %v568 = vpop.f32.mrb[0].mxu0
        %v569 = vadd.f32 0.0, %v568
        %v570 = vpop.f32.mrb[0].mxu0
        %v571 = vpop.f32.mrb[0].mxu0
        %v572 = vpop.f32.mrb[0].mxu0
        %573 = vdwg.mxu0
        %v574 = vrot.slane %v569, 4
        %v575 = vadd.f32 %v569, %v574
        %v576 = vrot.slane %v575, 2
        %v577 = vadd.f32 %v575, %v576
        %v578 = vrot.slane %v577, 1
        %v579 = vadd.f32 %v577, %v578
        %v580 = vmul.f32 %v579, %v447
        %v581 = vmul.f32 %v569, %v569
        %v582 = vrot.slane %v581, 4
        %v583 = vadd.f32 %v581, %v582
        %v584 = vrot.slane %v583, 2
        %v585 = vadd.f32 %v583, %v584
        %v586 = vrot.slane %v585, 1
        %v587 = vadd.f32 %v585, %v586
        %v588 = vmul.f32 %v587, %v447
        %v589 = vmul.f32 %v580, %v580
        %v590 = vsub.f32 %v588, %v589
        %v591 = vadd.f32 %v590, 0.8
        %v592 = vrsqrt.pop %v591
        %v593 = vmul.f32 %v328, %v592
        %v594 = vmul.f32 %v580, %v593
        %v595 = vsub.f32 %v329, %v594
        %v596 = vmul.f32 %v569, %v593
        %v597 = vadd.f32 %v596, %v595
        %vm598 = vcmp.gt.f32.partialorder %v597, 0.0
        %v599 = vmul.f32 %v597, 0.2
        %v600 = vsel %vm598, %v597, %v599
        %v601 = vpack.c.bf16 %v600, %v600
        %v602 = vld [vmem:[#allocation8] sm:$0xff]
        %v603 = vld [vmem:[#allocation8 + $0x8] sm:$0xff]
        %v604 = vld [vmem:[#allocation8 + $0x10] sm:$0xff]
        %v605 = vld [vmem:[#allocation8 + $0x18] sm:$0xff]
        %v606 = vld [vmem:[#allocation8 + $0x20] sm:$0xff]
        %v607 = vld [vmem:[#allocation8 + $0x28] sm:$0xff]
        %v608 = vld [vmem:[#allocation8 + $0x30] sm:$0xff]
        %v609 = vld [vmem:[#allocation8 + $0x38] sm:$0xff]
        %v610 = vld [vmem:[#allocation8 + $0x40] sm:$0xff]
        %v611 = vld [vmem:[#allocation8 + $0x48] sm:$0xff]
        %v612 = vld [vmem:[#allocation8 + $0x50] sm:$0xff]
        %v613 = vld [vmem:[#allocation8 + $0x58] sm:$0xff]
        %v614 = vld [vmem:[#allocation8 + $0x60] sm:$0xff]
        %v615 = vld [vmem:[#allocation8 + $0x68] sm:$0xff]
        %v616 = vld [vmem:[#allocation8 + $0x70] sm:$0xff]
        %v617 = vld [vmem:[#allocation8 + $0x78] sm:$0xff]
        %v634 = vunpack.c.l.b16 %v602
        %v635 = vunpack.c.h.b16 %v602
        %v636 = vunpack.c.l.b16 %v603
        %v637 = vunpack.c.h.b16 %v603
        %v638 = vunpack.c.l.b16 %v604
        %v639 = vunpack.c.h.b16 %v604
        %v640 = vunpack.c.l.b16 %v605
        %v641 = vunpack.c.h.b16 %v605
        %v642 = vunpack.c.l.b16 %v606
        %v643 = vunpack.c.h.b16 %v606
        %v644 = vunpack.c.l.b16 %v607
        %v645 = vunpack.c.h.b16 %v607
        %v646 = vunpack.c.l.b16 %v608
        %v647 = vunpack.c.h.b16 %v608
        %v648 = vunpack.c.l.b16 %v609
        %v649 = vunpack.c.h.b16 %v609
        %v650 = vunpack.c.l.b16 %v610
        %v651 = vunpack.c.h.b16 %v610
        %v652 = vunpack.c.l.b16 %v611
        %v653 = vunpack.c.h.b16 %v611
        %v654 = vunpack.c.l.b16 %v612
        %v655 = vunpack.c.h.b16 %v612
        %v656 = vunpack.c.l.b16 %v613
        %v657 = vunpack.c.h.b16 %v613
        %v658 = vunpack.c.l.b16 %v614
        %v659 = vunpack.c.h.b16 %v614
        %v660 = vunpack.c.l.b16 %v615
        %v661 = vunpack.c.h.b16 %v615
        %v662 = vunpack.c.l.b16 %v616
        %v663 = vunpack.c.h.b16 %v616
        %v664 = vunpack.c.l.b16 %v617
        %v665 = vunpack.c.h.b16 %v617
        %v666 = vpack.c.b16 %v636, %v634
        %v667 = vpack.c.b16 %v637, %v635
        %v668 = vpack.c.b16 %v640, %v638
        %v669 = vpack.c.b16 %v641, %v639
        %v670 = vpack.c.b16 %v644, %v642
        %v671 = vpack.c.b16 %v645, %v643
        %v672 = vpack.c.b16 %v648, %v646
        %v673 = vpack.c.b16 %v649, %v647
        %v674 = vpack.c.b16 %v652, %v650
        %v675 = vpack.c.b16 %v653, %v651
        %v676 = vpack.c.b16 %v656, %v654
        %v677 = vpack.c.b16 %v657, %v655
        %v678 = vpack.c.b16 %v660, %v658
        %v679 = vpack.c.b16 %v661, %v659
        %v680 = vpack.c.b16 %v664, %v662
        %v681 = vpack.c.b16 %v665, %v663
        %698 = vmatprep.subr.bf16.mxu0 %v667
        %699 = vmatpush1.bf16.msra.mxu0 %v666
        %700 = vmatprep.subr.bf16.mxu0 %v669
        %701 = vmatpush1.bf16.msra.mxu0 %v668
        %702 = vmatprep.subr.bf16.mxu0 %v671
        %703 = vmatpush1.bf16.msra.mxu0 %v670
        %704 = vmatprep.subr.bf16.mxu0 %v673
        %705 = vmatpush1.bf16.msra.mxu0 %v672
        %706 = vmatprep.subr.bf16.mxu0 %v675
        %707 = vmatpush1.bf16.msra.mxu0 %v674
        %708 = vmatprep.subr.bf16.mxu0 %v677
        %709 = vmatpush1.bf16.msra.mxu0 %v676
        %710 = vmatprep.subr.bf16.mxu0 %v679
        %711 = vmatpush1.bf16.msra.mxu0 %v678
        %712 = vmatprep.subr.bf16.mxu0 %v681
        %713 = vmatpush1.bf16.msra.mxu0 %v680
        %714 = vmatprep.subr.bf16.mxu0 0
        %715 = vmatpush1.bf16.msra.mxu0 0
        %716 = vmatprep.subr.bf16.mxu0 0
        %717 = vmatpush1.bf16.msra.mxu0 0
        %718 = vmatprep.subr.bf16.mxu0 0
        %719 = vmatpush1.bf16.msra.mxu0 0
        %720 = vmatprep.subr.bf16.mxu0 0
        %721 = vmatpush1.bf16.msra.mxu0 0
        %722 = vmatprep.subr.bf16.mxu0 0
        %723 = vmatpush1.bf16.msra.mxu0 0
        %724 = vmatprep.subr.bf16.mxu0 0
        %725 = vmatpush1.bf16.msra.mxu0 0
        %726 = vmatprep.subr.bf16.mxu0 0
        %727 = vmatpush1.bf16.msra.mxu0 0
        %728 = vmatprep.subr.bf16.mxu0 0
        %729 = vmatpush1.bf16.msra.mxu0 0
        %730 = vmatprep.mubr.bf16.mxu0 0
        %731 = vmatmul.mubr.bf16.gmra.mrb[0].mxu0 %v601
        %v732 = vpop.f32.mrb[0].mxu0
        %v733 = vadd.f32 0.0, %v732
        %v734 = vpop.f32.mrb[0].mxu0
        %v735 = vadd.f32 0.0, %v734
        %v736 = vpop.f32.mrb[0].mxu0
        %v737 = vpop.f32.mrb[0].mxu0
        %738 = vdwg.mxu0
        %v739 = vrot.slane %v733, 4
        %v740 = vadd.f32 %v733, %v739
        %v741 = vrot.slane %v740, 2
        %v742 = vadd.f32 %v740, %v741
        %v743 = vrot.slane %v742, 1
        %v744 = vadd.f32 %v742, %v743
        %v745 = vrot.slane %v735, 4
        %v746 = vadd.f32 %v735, %v745
        %v747 = vrot.slane %v746, 2
        %v748 = vadd.f32 %v746, %v747
        %v749 = vrot.slane %v748, 1
        %v750 = vadd.f32 %v748, %v749
        %v751 = vmul.f32 %v744, %v447
        %v752 = vmul.f32 %v750, %v447
        %v753 = vmul.f32 %v733, %v733
        %v754 = vmul.f32 %v735, %v735
        %v755 = vrot.slane %v753, 4
        %v756 = vadd.f32 %v753, %v755
        %v757 = vrot.slane %v756, 2
        %v758 = vadd.f32 %v756, %v757
        %v759 = vrot.slane %v758, 1
        %v760 = vadd.f32 %v758, %v759
        %v761 = vrot.slane %v754, 4
        %v762 = vadd.f32 %v754, %v761
        %v763 = vrot.slane %v762, 2
        %v764 = vadd.f32 %v762, %v763
        %v765 = vrot.slane %v764, 1
        %v766 = vadd.f32 %v764, %v765
        %v767 = vmul.f32 %v760, %v447
        %v768 = vmul.f32 %v766, %v447
        %v769 = vmul.f32 %v751, %v751
        %v770 = vmul.f32 %v752, %v752
        %v771 = vsub.f32 %v767, %v769
        %v772 = vsub.f32 %v768, %v770
        %v773 = vadd.f32 %v771, 0.8
        %v774 = vadd.f32 %v772, 0.8
        %v775 = vrsqrt.pop %v773
        %v776 = vrsqrt.pop %v774
        %v779 = vcombine.low %v775, %v776
        %v781 = vunpack.c.l.s4 1966171168
        %v782 = vunpack.c.0.s8 %v781
        %v783 = vlaneseq
        %v784 = vshrl.u32 %v783, 7
        %v785 = vsub.s32 %v782, %v784
        %v786 = vrot.slane %v779, %v785
        %v788 = vunpack.c.l.s4 1966171168
        %v789 = vunpack.c.0.s8 %v788
        %v790 = vlaneseq
        %v791 = vshrl.u32 %v790, 7
        %v792 = vsub.s32 %v789, %v791
        %v793 = vrot.slane %v786, %v792
        %v795 = vmul.f32 %v331, %v793
        %v797 = vlaneseq
        %v798 = vshrl.u32 %v797, 7
        %v799 = vsub.s32 0, %v798
        %v800 = vrot.slane %v795, %v799
        %v801 = vlaneseq
        %v802 = vshrl.u32 %v801, 7
        %v803 = vsub.s32 1, %v802
        %v804 = vrot.slane %v795, %v803
        %v807 = vmul.f32 %v751, %v800
        %v808 = vmul.f32 %v752, %v804
        %v811 = vcombine.low %v807, %v808
        %v813 = vunpack.c.l.s4 1966171168
        %v814 = vunpack.c.0.s8 %v813
        %v815 = vlaneseq
        %v816 = vshrl.u32 %v815, 7
        %v817 = vsub.s32 %v814, %v816
        %v818 = vrot.slane %v811, %v817
        %v820 = vunpack.c.l.s4 1966171168
        %v821 = vunpack.c.0.s8 %v820
        %v822 = vlaneseq
        %v823 = vshrl.u32 %v822, 7
        %v824 = vsub.s32 %v821, %v823
        %v825 = vrot.slane %v818, %v824
        %v827 = vsub.f32 %v333, %v825
        %v828 = vmul.f32 %v733, %v800
        %v829 = vmul.f32 %v735, %v804
        %v831 = vlaneseq
        %v832 = vshrl.u32 %v831, 7
        %v833 = vsub.s32 0, %v832
        %v834 = vrot.slane %v827, %v833
        %v835 = vlaneseq
        %v836 = vshrl.u32 %v835, 7
        %v837 = vsub.s32 1, %v836
        %v838 = vrot.slane %v827, %v837
        %v841 = vadd.f32 %v828, %v834
        %v842 = vadd.f32 %v829, %v838
        %vm843 = vcmp.gt.f32.partialorder %v841, 0.0
        %vm844 = vcmp.gt.f32.partialorder %v842, 0.0
        %v845 = vmul.f32 %v841, 0.2
        %v846 = vmul.f32 %v842, 0.2
        %v847 = vsel %vm843, %v841, %v845
        %v848 = vsel %vm844, %v842, %v846
        %v849 = vpack.c.bf16 %v847, %v847
        %v850 = vpack.c.bf16 %v848, %v848
        %v851 = vld [vmem:[#allocation10] sm:$0xf]
        %v852 = vld [vmem:[#allocation10 + $0x4] sm:$0xf]
        %v853 = vld [vmem:[#allocation10 + $0x8] sm:$0xf]
        %v854 = vld [vmem:[#allocation10 + $0xc] sm:$0xf]
        %v855 = vld [vmem:[#allocation10 + $0x10] sm:$0xf]
        %v856 = vld [vmem:[#allocation10 + $0x14] sm:$0xf]
        %v857 = vld [vmem:[#allocation10 + $0x18] sm:$0xf]
        %v858 = vld [vmem:[#allocation10 + $0x1c] sm:$0xf]
        %v859 = vld [vmem:[#allocation10 + $0x20] sm:$0xf]
        %v860 = vld [vmem:[#allocation10 + $0x24] sm:$0xf]
        %v861 = vld [vmem:[#allocation10 + $0x28] sm:$0xf]
        %v862 = vld [vmem:[#allocation10 + $0x2c] sm:$0xf]
        %v863 = vld [vmem:[#allocation10 + $0x30] sm:$0xf]
        %v864 = vld [vmem:[#allocation10 + $0x34] sm:$0xf]
        %v865 = vld [vmem:[#allocation10 + $0x38] sm:$0xf]
        %v866 = vld [vmem:[#allocation10 + $0x3c] sm:$0xf]
        %v867 = vld [vmem:[#allocation10 + $0x40] sm:$0xf]
        %v868 = vld [vmem:[#allocation10 + $0x44] sm:$0xf]
        %v869 = vld [vmem:[#allocation10 + $0x48] sm:$0xf]
        %v870 = vld [vmem:[#allocation10 + $0x4c] sm:$0xf]
        %v871 = vld [vmem:[#allocation10 + $0x50] sm:$0xf]
        %v872 = vld [vmem:[#allocation10 + $0x54] sm:$0xf]
        %v873 = vld [vmem:[#allocation10 + $0x58] sm:$0xf]
        %v874 = vld [vmem:[#allocation10 + $0x5c] sm:$0xf]
        %v875 = vld [vmem:[#allocation10 + $0x60] sm:$0xf]
        %v876 = vld [vmem:[#allocation10 + $0x64] sm:$0xf]
        %v877 = vld [vmem:[#allocation10 + $0x68] sm:$0xf]
        %v878 = vld [vmem:[#allocation10 + $0x6c] sm:$0xf]
        %v879 = vld [vmem:[#allocation10 + $0x70] sm:$0xf]
        %v880 = vld [vmem:[#allocation10 + $0x74] sm:$0xf]
        %v881 = vld [vmem:[#allocation10 + $0x78] sm:$0xf]
        %v882 = vld [vmem:[#allocation10 + $0x7c] sm:$0xf]
        %v915 = vunpack.c.l.b16 %v851
        %v916 = vunpack.c.l.b16 %v852
        %v917 = vunpack.c.l.b16 %v853
        %v918 = vunpack.c.l.b16 %v854
        %v919 = vunpack.c.l.b16 %v855
        %v920 = vunpack.c.l.b16 %v856
        %v921 = vunpack.c.l.b16 %v857
        %v922 = vunpack.c.l.b16 %v858
        %v923 = vunpack.c.l.b16 %v859
        %v924 = vunpack.c.l.b16 %v860
        %v925 = vunpack.c.l.b16 %v861
        %v926 = vunpack.c.l.b16 %v862
        %v927 = vunpack.c.l.b16 %v863
        %v928 = vunpack.c.l.b16 %v864
        %v929 = vunpack.c.l.b16 %v865
        %v930 = vunpack.c.l.b16 %v866
        %v931 = vunpack.c.l.b16 %v867
        %v932 = vunpack.c.l.b16 %v868
        %v933 = vunpack.c.l.b16 %v869
        %v934 = vunpack.c.l.b16 %v870
        %v935 = vunpack.c.l.b16 %v871
        %v936 = vunpack.c.l.b16 %v872
        %v937 = vunpack.c.l.b16 %v873
        %v938 = vunpack.c.l.b16 %v874
        %v939 = vunpack.c.l.b16 %v875
        %v940 = vunpack.c.l.b16 %v876
        %v941 = vunpack.c.l.b16 %v877
        %v942 = vunpack.c.l.b16 %v878
        %v943 = vunpack.c.l.b16 %v879
        %v944 = vunpack.c.l.b16 %v880
        %v945 = vunpack.c.l.b16 %v881
        %v946 = vunpack.c.l.b16 %v882
        %v947 = vpack.c.b16 %v916, %v915
        %v948 = vpack.c.b16 %v918, %v917
        %v949 = vpack.c.b16 %v920, %v919
        %v950 = vpack.c.b16 %v922, %v921
        %v951 = vpack.c.b16 %v924, %v923
        %v952 = vpack.c.b16 %v926, %v925
        %v953 = vpack.c.b16 %v928, %v927
        %v954 = vpack.c.b16 %v930, %v929
        %v955 = vpack.c.b16 %v932, %v931
        %v956 = vpack.c.b16 %v934, %v933
        %v957 = vpack.c.b16 %v936, %v935
        %v958 = vpack.c.b16 %v938, %v937
        %v959 = vpack.c.b16 %v940, %v939
        %v960 = vpack.c.b16 %v942, %v941
        %v961 = vpack.c.b16 %v944, %v943
        %v962 = vpack.c.b16 %v946, %v945
        %979 = vmatprep.subr.bf16.mxu0 0
        %980 = vmatpush1.bf16.msra.mxu0 %v947
        %981 = vmatprep.subr.bf16.mxu0 0
        %982 = vmatpush1.bf16.msra.mxu0 %v948
        %983 = vmatprep.subr.bf16.mxu0 0
        %984 = vmatpush1.bf16.msra.mxu0 %v949
        %985 = vmatprep.subr.bf16.mxu0 0
        %986 = vmatpush1.bf16.msra.mxu0 %v950
        %987 = vmatprep.subr.bf16.mxu0 0
        %988 = vmatpush1.bf16.msra.mxu0 %v951
        %989 = vmatprep.subr.bf16.mxu0 0
        %990 = vmatpush1.bf16.msra.mxu0 %v952
        %991 = vmatprep.subr.bf16.mxu0 0
        %992 = vmatpush1.bf16.msra.mxu0 %v953
        %993 = vmatprep.subr.bf16.mxu0 0
        %994 = vmatpush1.bf16.msra.mxu0 %v954
        %995 = vmatprep.subr.bf16.mxu0 0
        %996 = vmatpush1.bf16.msra.mxu0 %v955
        %997 = vmatprep.subr.bf16.mxu0 0
        %998 = vmatpush1.bf16.msra.mxu0 %v956
        %999 = vmatprep.subr.bf16.mxu0 0
        %1000 = vmatpush1.bf16.msra.mxu0 %v957
        %1001 = vmatprep.subr.bf16.mxu0 0
        %1002 = vmatpush1.bf16.msra.mxu0 %v958
        %1003 = vmatprep.subr.bf16.mxu0 0
        %1004 = vmatpush1.bf16.msra.mxu0 %v959
        %1005 = vmatprep.subr.bf16.mxu0 0
        %1006 = vmatpush1.bf16.msra.mxu0 %v960
        %1007 = vmatprep.subr.bf16.mxu0 0
        %1008 = vmatpush1.bf16.msra.mxu0 %v961
        %1009 = vmatprep.subr.bf16.mxu0 0
        %1010 = vmatpush1.bf16.msra.mxu0 %v962
        %1011 = vmatprep.mubr.bf16.mxu0 %v850
        %1012 = vmatmul.mubr.bf16.gmra.mrb[0].mxu0 %v849
        %v1013 = vpop.f32.mrb[0].mxu0
        %v1014 = vadd.f32 %v334, %v1013
        %v1015 = vpop.f32.mrb[0].mxu0
        %v1016 = vpop.f32.mrb[0].mxu0
        %v1017 = vpop.f32.mrb[0].mxu0
        %1018 = vdwg.mxu0
        %1019 = vst [vmem:[%s324] sm:$0xff] %v1014
        %s1020 = sand.u32 %s164, 1
        %s1021 = scalar_lea.sflag [#allocation4], %s1020
        %s1022 = sand.u32 %s164, 1
        %s1023 = smul.addr %s1022, 8
        %s1024 = scalar_lea.vmem [#allocation11], %s1023
        // Predicated region
        $region65: #{tpu_custom_call.1} parent=43 // pred_check
          %p1025 = pneg %p174
        $region66: #{tpu_custom_call.1} parent=43 // pred_check_branch
          %1027 = sbr.rel (%p1025) target = $region68
        $region67: #{tpu_custom_call.1} parent=43 // pred_region
          %s1029 = ssub.s32 128, 128
          %1030 = vsyncadd %s1021, %s1029
          %s1031 = smul.addr %s25, 128
          %s1032 = scalar_lea.hbm %s6, %s1031
          %s1034 = sshll.u32 %s1024, 4
          %s1035 = int_to_ptr.vmem [resolvable:$true] %s1034
          %1037 = dma.vmem_to_hbm [thread:$0]  %s1035, 128, %s1032, %s1021
        $region68: #{tpu_custom_call.1} parent=43 // pred_fallthru
          _
      $region44: #{tpu_custom_call.1} parent=5 // pred_fallthru
        _
      %p1038 = scmp.le.s32.totalorder 2, %s20
      // Predicated region
      $region69: #{tpu_custom_call.1} parent=5 // pred_check
        %p1039 = pneg %p1038
      $region70: #{tpu_custom_call.1} parent=5 // pred_check_branch
        %1041 = sbr.rel (%p1039) target = $region72
      $region71: #{tpu_custom_call.1} parent=5 // pred_region
        %s1042 = ssub.s32 %s20, 2
        // Predicated region
        $region73: #{tpu_custom_call.1} parent=71 // pred_check
          %p1043 = pneg %p180
        $region74: #{tpu_custom_call.1} parent=71 // pred_check_branch
          %1045 = sbr.rel (%p1043) target = $region76
        $region75: #{tpu_custom_call.1} parent=71 // pred_region
          %s1046 = sand.u32 %s165, 1
          %s1047 = scalar_lea.sflag [#allocation4], %s1046
          %s1048 = sand.u32 %s165, 1
          %s1049 = smul.addr %s1048, 8
          %s1050 = scalar_lea.vmem [#allocation11], %s1049
          %1051 = dma.done %s1047, 128
        $region76: #{tpu_custom_call.1} parent=71 // pred_fallthru
          _
      $region72: #{tpu_custom_call.1} parent=5 // pred_fallthru
        _
    $region6: #{tpu_custom_call.1} parent=1 // loop_footer
      %s24 = sadd.s32 1, %s20
    $region7: #{tpu_custom_call.1} parent=1 // loop_footer_branch
      %19 = sbr.rel target = $region3
    $region8: #{tpu_custom_call.1} parent=1 // loop_exit
      _
    %1052 = vsyncpa [#allocation3], 1
    %s1053 = scalar_lea.sflag [#allocation3], 1
    %1054 = vsyncpa %s1053, 1
    %1055 = vsyncpa [#allocation6], 1
    %1056 = vsyncpa [#allocation9], 1
    %1057 = vsyncpa [#allocation4], 1
    %s1058 = scalar_lea.sflag [#allocation4], 1
    %1059 = vsyncpa %s1058, 1

</llo_original>
